<compile_context>
chip_gen: v6e
topology: v6e:2x2x1
jax: 0.10.0
libtpu: 0.0.40
codegen_flags: <defaults>
</compile_context>

<pallas_src>
import functools

import jax
import jax.numpy as jnp
from jax.experimental import pallas as pl
from jax.experimental.pallas import tpu as pltpu


def _ce_kernel(logits_ref, y_ref, out_ref, *, num_classes, nb, bj, mask_last):
    """Softmax cross-entropy for one (TILE_R, 128) pixel tile.

    Block shapes:
      logits_ref: (1, C, TILE_R, 128)   y_ref: (1, 1, TILE_R, 128)
      out_ref   : (1, 1, TILE_R, 128)   (resident accumulator across the
                                         "arbitrary" pixel-block axis)
    Class reduction is an unrolled elementwise tree over C (dense VPU).
    """
    p = pl.program_id(1)
    j = pl.program_id(2)

    @pl.when(j == 0)
    def _():
        out_ref[...] = jnp.zeros(out_ref.shape, out_ref.dtype)

    labels = y_ref[0, 0].astype(jnp.int32)                      # (TILE_R, 128)

    xs = [logits_ref[0, cc].astype(jnp.float32) for cc in range(num_classes)]

    # Numerically-stable log-softmax over classes, unrolled (no XLU reduce).
    m = xs[0]
    for cc in range(1, num_classes):
        m = jnp.maximum(m, xs[cc])

    z0 = xs[0] - m
    s = jnp.exp(z0)
    tgt = jnp.where(labels == 0, z0, 0.0)
    for cc in range(1, num_classes):
        zc = xs[cc] - m
        s = s + jnp.exp(zc)
        tgt = jnp.where(labels == cc, zc, tgt)

    nll = jnp.log(s) - tgt                                       # (TILE_R, 128)

    if mask_last:
        # Padded pixels carry label -1; they only live in the last block.
        is_last = (p * bj + j) == (nb - 1)

        @pl.when(is_last)
        def _():
            out_ref[0, 0] += jnp.where(labels >= 0, nll, 0.0)

        @pl.when(p * bj + j < nb - 1)
        def _():
            out_ref[0, 0] += nll
    else:
        out_ref[0, 0] += nll


def _choose_row_tile(r, c, itemsize, target_block_bytes=2 * 1024 * 1024):
    """Pick TILE_R (in 128-pixel rows) so the logits block is ~2 MiB.

    2 MiB double-buffered fits the scoped VMEM default on v5e/v6e/v7x and is
    already well past the block-size knee for HBM-roofline utilisation.
    TILE_R is either the full row extent or a multiple of 32 (valid
    second-minor block dim for f32/bf16 logits and int8 labels alike);
    a divisor of R is preferred so no partial block / masking is needed.
    """
    bytes_per_row = c * 128 * itemsize
    target = max(32, (target_block_bytes // bytes_per_row) // 32 * 32)
    if r <= target:
        return r
    for t in range(target, 31, -32):
        if r % t == 0:
            return t
    return target  # partial last block; handled by padding + masking


def cross_entropy_loss(logits_nchw, y_nhw):
    """Mean per-pixel softmax CE (== torch.nn.CrossEntropyLoss on NCHW logits)."""
    n, c, h, w = logits_nchw.shape
    hw = h * w

    r0 = pl.cdiv(hw, 128)
    tile_r = _choose_row_tile(r0, c, logits_nchw.dtype.itemsize)
    nb = pl.cdiv(r0, tile_r)
    rows = nb * tile_r
    hw_pad = rows * 128

    # Channels-first, lane-dense layout, consumed straight from NCHW (free
    # reshape).  Labels keep their native (possibly int8) dtype -- no cast pass.
    logits3d = logits_nchw.reshape(n, c, hw)
    labels3d = y_nhw.reshape(n, 1, hw)

    mask_needed = hw_pad != hw
    if mask_needed:
        if not jnp.issubdtype(labels3d.dtype, jnp.signedinteger):
            labels3d = labels3d.astype(jnp.int32)
        logits3d = jnp.pad(logits3d, ((0, 0), (0, 0), (0, hw_pad - hw)))
        labels3d = jnp.pad(labels3d, ((0, 0), (0, 0), (0, hw_pad - hw)),
                           constant_values=-1)

    logits4d = logits3d.reshape(n, c, rows, 128)
    labels4d = labels3d.reshape(n, 1, rows, 128)

    # Split the pixel-block axis 2-way when possible so v7x megacore can use
    # its second TensorCore even for N=1 (no-op on v5e/v6e single-TC chips).
    if nb % 2 == 0 and nb >= 2:
        po, bj = 2, nb // 2
    else:
        po, bj = 1, nb

    partial = pl.pallas_call(
        functools.partial(_ce_kernel, num_classes=c, nb=nb, bj=bj,
                          mask_last=mask_needed),
        out_shape=jax.ShapeDtypeStruct((n, po, tile_r, 128), jnp.float32),
        grid_spec=pltpu.PrefetchScalarGridSpec(
            num_scalar_prefetch=0,
            grid=(n, po, bj),
            in_specs=[
                pl.BlockSpec((1, c, tile_r, 128),
                             lambda i, p, j: (i, 0, p * bj + j, 0)),
                pl.BlockSpec((1, 1, tile_r, 128),
                             lambda i, p, j: (i, 0, p * bj + j, 0)),
            ],
            out_specs=pl.BlockSpec((1, 1, tile_r, 128),
                                   lambda i, p, j: (i, p, 0, 0)),
        ),
        compiler_params=pltpu.CompilerParams(
            dimension_semantics=("parallel", "parallel", "arbitrary")),
    )(logits4d, labels4d)

    # Tiny final reduction + mean in plain JAX (denominator = real pixels only;
    # padded pixels contributed exactly 0).
    return jnp.sum(partial) / jnp.float32(n * hw)


def downsample_ground_truth(logits, y):
    """F.interpolate(y, size=logits.shape[2:], mode='nearest') for an int label map.

    Single fused gather; emits int8 when the class count allows it so the CE
    kernel reads 1 byte/pixel of label traffic.
    """
    oh, ow = logits.shape[2], logits.shape[3]
    n, h, w = y.shape
    ri = (jnp.arange(oh) * h) // oh          # floor(i * H_in / H_out) == 'nearest'
    ci = (jnp.arange(ow) * w) // ow
    flat_idx = (ri[:, None] * w + ci[None, :]).reshape(-1)
    y_ds = jnp.take(y.reshape(n, h * w), flat_idx, axis=1).reshape(n, oh, ow)
    out_dtype = jnp.int8 if logits.shape[1] <= 127 else jnp.int32
    return y_ds.astype(out_dtype)


def deep_supervision_loss(out, batch, deep_supervision_weights):
    """Mirror of DeepSupervision.forward."""
    loss_dict = {}
    loss_dict["loss0"] = cross_entropy_loss(out["logits"], batch["y"])
    for idx, logits in enumerate(out["aux_logits"]):
        downsampled_y = downsample_ground_truth(logits, batch["y"])
        loss_dict[f"loss{idx + 1}"] = cross_entropy_loss(logits, downsampled_y)
    weighted = [
        v * deep_supervision_weights[int(k.replace("loss", ""))]
        for k, v in loss_dict.items()
    ]
    loss_dict["loss"] = jnp.stack(weighted).sum(0)
    return loss_dict


if __name__ == "__main__":
    key = jax.random.PRNGKey(0)
    k1, k2, k3, k4, k5, k6 = jax.random.split(key, 6)

    N, C, H, W = 2, 4, 16, 16
    main_logits = jax.random.normal(k1, (N, C, H, W), jnp.float32)
    aux_logits = [
        jax.random.normal(k2, (N, C, H // 2, W // 2), jnp.float32),
        jax.random.normal(k3, (N, C, H // 4, W // 4), jnp.float32),
    ]
    y = jax.random.randint(k4, (N, H, W), 0, C, jnp.int32)

    deep_supervision_weights = (1.0, 0.5, 0.25)
    out = {"logits": main_logits, "aux_logits": aux_logits}
    batch = {"y": y}

    loss_dict = deep_supervision_loss(out, batch, deep_supervision_weights)
    jax.block_until_ready(loss_dict["loss"])

    # ------------------------------------------------------------------
    # Self-checks against a pure-JAX reference (covers the clean-tiling,
    # padded/masked + int8-label, and multi-block + 2-way-split code paths).
    # ------------------------------------------------------------------
    def ref_ce(logits, labels):
        logp = jax.nn.log_softmax(logits.astype(jnp.float32), axis=1)
        picked = jnp.take_along_axis(
            logp, labels.astype(jnp.int32)[:, None], axis=1)[:, 0]
        return -jnp.mean(picked)

    def check(name, got, want, rtol=1e-4, atol=1e-5):
        if not bool(jnp.allclose(got, want, rtol=rtol, atol=atol)):
            raise AssertionError(f"{name}: pallas={got} ref={want}")

    check("loss0", loss_dict["loss0"], ref_ce(main_logits, y))
    ds0 = downsample_ground_truth(aux_logits[0], y)
    check("loss1", loss_dict["loss1"], ref_ce(aux_logits[0], ds0))
    ds1 = downsample_ground_truth(aux_logits[1], y)
    check("loss2", loss_dict["loss2"], ref_ce(aux_logits[1], ds1))

    big_logits = jax.random.normal(k5, (1, 4, 512, 1024), jnp.float32)
    big_y = jax.random.randint(k6, (1, 512, 1024), 0, 4, jnp.int32)
    check("loss_big", cross_entropy_loss(big_logits, big_y),
          ref_ce(big_logits, big_y))

    print("KERNEL_OK")
</pallas_src>

<mosaic_0001>
module attributes {stable_mosaic.version = 11 : i64} {
  func.func @_ce_kernel(%arg0: i32, %arg1: i32, %arg2: i32, %arg3: memref<1x4x2x128xf32, #tpu.memory_space<vmem>>, %arg4: memref<1x1x2x128xi32, #tpu.memory_space<vmem>>, %arg5: memref<1x1x2x128xf32, #tpu.memory_space<vmem>>) attributes {dimension_semantics = [#tpu.dimension_semantics<parallel>, #tpu.dimension_semantics<parallel>, #tpu.dimension_semantics<arbitrary>], iteration_bounds = array<i64: 2, 1, 1>, scalar_prefetch = 0 : i64, scratch_operands = 0 : i64, tpu.core_type = #tpu.core_type<tc>, window_params = [{transform_indices = @transform_0, window_bounds = array<i64: 1, 4, 2, 128>}, {transform_indices = @transform_1, window_bounds = array<i64: 1, 1, 2, 128>}, {transform_indices = @transform_2, window_bounds = array<i64: 1, 1, 2, 128>}]} {
    %c0_i32 = arith.constant 0 : i32
    %0 = arith.cmpi eq, %arg2, %c0_i32 : i32
    %1 = arith.extui %0 : i1 to i32
    %c0_i32_0 = arith.constant 0 : i32
    %2 = arith.cmpi ne, %1, %c0_i32_0 : i32
    scf.if %2 {
      %cst_26 = arith.constant 0.000000e+00 : f32
      %48 = vector.broadcast %cst_26 : f32 to vector<1x1x2x128xf32>
      %c0_27 = arith.constant 0 : index
      %c0_28 = arith.constant 0 : index
      %c0_29 = arith.constant 0 : index
      %c0_30 = arith.constant 0 : index
      %49 = vector.load %arg5[%c0_27, %c0_28, %c0_29, %c0_30] : memref<1x1x2x128xf32, #tpu.memory_space<vmem>>, vector<1x1x2x128xf32>
      tpu.vector_store %arg5[%c0_27, %c0_28, %c0_29, %c0_30], %48 {strides = array<i32>} : memref<1x1x2x128xf32, #tpu.memory_space<vmem>>, vector<1x1x2x128xf32>,
    } else {
    }
    %c0 = arith.constant 0 : index
    %c0_1 = arith.constant 0 : index
    %c0_2 = arith.constant 0 : index
    %c0_3 = arith.constant 0 : index
    %3 = vector.load %arg4[%c0, %c0_1, %c0_2, %c0_3] : memref<1x1x2x128xi32, #tpu.memory_space<vmem>>, vector<1x1x2x128xi32>
    %4 = vector.shape_cast %3 : vector<1x1x2x128xi32> to vector<2x128xi32>
    %c0_4 = arith.constant 0 : index
    %c0_5 = arith.constant 0 : index
    %c0_6 = arith.constant 0 : index
    %c0_7 = arith.constant 0 : index
    %5 = vector.load %arg3[%c0_4, %c0_5, %c0_6, %c0_7] : memref<1x4x2x128xf32, #tpu.memory_space<vmem>>, vector<1x1x2x128xf32>
    %6 = vector.shape_cast %5 : vector<1x1x2x128xf32> to vector<2x128xf32>
    %c0_8 = arith.constant 0 : index
    %c1 = arith.constant 1 : index
    %c0_9 = arith.constant 0 : index
    %c0_10 = arith.constant 0 : index
    %7 = vector.load %arg3[%c0_8, %c1, %c0_9, %c0_10] : memref<1x4x2x128xf32, #tpu.memory_space<vmem>>, vector<1x1x2x128xf32>
    %8 = vector.shape_cast %7 : vector<1x1x2x128xf32> to vector<2x128xf32>
    %c0_11 = arith.constant 0 : index
    %c2 = arith.constant 2 : index
    %c0_12 = arith.constant 0 : index
    %c0_13 = arith.constant 0 : index
    %9 = vector.load %arg3[%c0_11, %c2, %c0_12, %c0_13] : memref<1x4x2x128xf32, #tpu.memory_space<vmem>>, vector<1x1x2x128xf32>
    %10 = vector.shape_cast %9 : vector<1x1x2x128xf32> to vector<2x128xf32>
    %c0_14 = arith.constant 0 : index
    %c3 = arith.constant 3 : index
    %c0_15 = arith.constant 0 : index
    %c0_16 = arith.constant 0 : index
    %11 = vector.load %arg3[%c0_14, %c3, %c0_15, %c0_16] : memref<1x4x2x128xf32, #tpu.memory_space<vmem>>, vector<1x1x2x128xf32>
    %12 = vector.shape_cast %11 : vector<1x1x2x128xf32> to vector<2x128xf32>
    %13 = arith.maximumf %6, %8 : vector<2x128xf32>
    %14 = arith.maximumf %13, %10 : vector<2x128xf32>
    %15 = arith.maximumf %14, %12 : vector<2x128xf32>
    %16 = arith.subf %6, %15 : vector<2x128xf32>
    %17 = math.exp %16 : vector<2x128xf32>
    %c0_i32_17 = arith.constant 0 : i32
    %18 = vector.broadcast %c0_i32_17 : i32 to vector<2x128xi32>
    %19 = arith.cmpi eq, %4, %18 : vector<2x128xi32>
    %cst = arith.constant 0.000000e+00 : f32
    %20 = vector.broadcast %cst : f32 to vector<2x128xf32>
    %21 = arith.select %19, %16, %20 : vector<2x128xi1>, vector<2x128xf32>
    %22 = arith.subf %8, %15 : vector<2x128xf32>
    %23 = math.exp %22 : vector<2x128xf32>
    %24 = arith.addf %17, %23 : vector<2x128xf32>
    %c1_i32 = arith.constant 1 : i32
    %25 = vector.broadcast %c1_i32 : i32 to vector<2x128xi32>
    %26 = arith.cmpi eq, %4, %25 : vector<2x128xi32>
    %27 = arith.select %26, %22, %21 : vector<2x128xi1>, vector<2x128xf32>
    %28 = arith.subf %10, %15 : vector<2x128xf32>
    %29 = math.exp %28 : vector<2x128xf32>
    %30 = arith.addf %24, %29 : vector<2x128xf32>
    %c2_i32 = arith.constant 2 : i32
    %31 = vector.broadcast %c2_i32 : i32 to vector<2x128xi32>
    %32 = arith.cmpi eq, %4, %31 : vector<2x128xi32>
    %33 = arith.select %32, %28, %27 : vector<2x128xi1>, vector<2x128xf32>
    %34 = arith.subf %12, %15 : vector<2x128xf32>
    %35 = math.exp %34 : vector<2x128xf32>
    %36 = arith.addf %30, %35 : vector<2x128xf32>
    %c3_i32 = arith.constant 3 : i32
    %37 = vector.broadcast %c3_i32 : i32 to vector<2x128xi32>
    %38 = arith.cmpi eq, %4, %37 : vector<2x128xi32>
    %39 = arith.select %38, %34, %33 : vector<2x128xi1>, vector<2x128xf32>
    %40 = math.log %36 : vector<2x128xf32>
    %41 = arith.subf %40, %39 : vector<2x128xf32>
    %c0_18 = arith.constant 0 : index
    %c0_19 = arith.constant 0 : index
    %c0_20 = arith.constant 0 : index
    %c0_21 = arith.constant 0 : index
    %42 = vector.load %arg5[%c0_18, %c0_19, %c0_20, %c0_21] : memref<1x1x2x128xf32, #tpu.memory_space<vmem>>, vector<1x1x2x128xf32>
    %43 = vector.shape_cast %42 : vector<1x1x2x128xf32> to vector<2x128xf32>
    %44 = arith.addf %43, %41 : vector<2x128xf32>
    %c0_22 = arith.constant 0 : index
    %c0_23 = arith.constant 0 : index
    %c0_24 = arith.constant 0 : index
    %c0_25 = arith.constant 0 : index
    %45 = vector.load %arg5[%c0_22, %c0_23, %c0_24, %c0_25] : memref<1x1x2x128xf32, #tpu.memory_space<vmem>>, vector<1x1x2x128xf32>
    %46 = vector.shape_cast %45 : vector<1x1x2x128xf32> to vector<2x128xf32>
    %47 = vector.shape_cast %44 : vector<2x128xf32> to vector<1x1x2x128xf32>
    tpu.vector_store %arg5[%c0_22, %c0_23, %c0_24, %c0_25], %47 {strides = array<i32>} : memref<1x1x2x128xf32, #tpu.memory_space<vmem>>, vector<1x1x2x128xf32>,
    return
  }
  func.func @transform_0(%arg0: i32, %arg1: i32, %arg2: i32) -> (i32, i32, i32, i32) {
    %c1_i32 = arith.constant 1 : i32
    %0 = arith.muli %arg1, %c1_i32 : i32
    %1 = arith.addi %0, %arg2 : i32
    %c0_i32 = arith.constant 0 : i32
    %c0_i32_0 = arith.constant 0 : i32
    %c0_i32_1 = arith.constant 0 : i32
    return %arg0, %c0_i32, %1, %c0_i32_0 : i32, i32, i32, i32
  }
  func.func @transform_1(%arg0: i32, %arg1: i32, %arg2: i32) -> (i32, i32, i32, i32) {
    %c1_i32 = arith.constant 1 : i32
    %0 = arith.muli %arg1, %c1_i32 : i32
    %1 = arith.addi %0, %arg2 : i32
    %c0_i32 = arith.constant 0 : i32
    %c0_i32_0 = arith.constant 0 : i32
    %c0_i32_1 = arith.constant 0 : i32
    return %arg0, %c0_i32, %1, %c0_i32_0 : i32, i32, i32, i32
  }
  func.func @transform_2(%arg0: i32, %arg1: i32, %arg2: i32) -> (i32, i32, i32, i32) {
    %c0_i32 = arith.constant 0 : i32
    %c0_i32_0 = arith.constant 0 : i32
    %c0_i32_1 = arith.constant 0 : i32
    return %arg0, %arg1, %c0_i32, %c0_i32_0 : i32, i32, i32, i32
  }
}

</mosaic_0001>

<llo_original>
// kernel: tpu_custom_call.1
$region0: #{tpu_custom_call.1}
  #allocation0 [shape = 'u32[]', space=smem, size = 0x4, offset = 0x4, fixed_abs, tag = 'smem constant byte address 0x4 - core index']
  #allocation1 [shape = 'u32[144,128]{1,0:T(1,128)}', space=vmem, size = 0x12000, scoped, tag = 'internal scratch']
  %s0 = inlined_call_operand.hbm [shape: f32[2,4,2,128], index: 0, kind: input, shape index: {}]
  %s1 = inlined_call_operand.hbm [shape: s32[2,1,2,128], index: 1, kind: input, shape index: {}]
  %s2 = inlined_call_operand.hbm [shape: f32[2,1,2,128], index: 2, kind: output, shape index: {}]
  %s3 = sld [smem:[#allocation0]]
  $region53: #{tpu_custom_call.1} parent=0
    _
  %s5 = ssub.s32 1, %s3
  %s6 = scalar_select 0, %s5, %s3
  $region1: #{tpu_custom_call.1} parent=0
    #allocation2 [shape = 'u8[8192]{0}', space=vmem, size = 0x2000, scoped, tag = 'input window, operand 0']
    #allocation3 [shape = 's32[2]{0}', space=sflag, size = 0x8, scoped, tag = 'scoped memory for tpu_custom_call.1']
    #allocation4 [shape = 's32[2]{0}', space=sflag, size = 0x8, scoped, tag = 'scoped memory for tpu_custom_call.1']
    #allocation5 [shape = 'u8[2048]{0}', space=vmem, size = 0x800, scoped, tag = 'input window, operand 1']
    #allocation6 [shape = 's32[2]{0}', space=sflag, size = 0x8, scoped, tag = 'scoped memory for tpu_custom_call.1']
    #allocation7 [shape = 'u8[2048]{0}', space=vmem, size = 0x800, scoped, tag = 'output window, operand 0']
    %7 = vsyncpa [#allocation3], 0
    %s8 = scalar_lea.sflag [#allocation3], 1
    %9 = vsyncpa %s8, 0
    %10 = vsyncpa [#allocation6], 0
    %s11 = scalar_lea.sflag [#allocation6], 1
    %12 = vsyncpa %s11, 0
    %13 = vsyncpa [#allocation4], 0
    %s14 = scalar_lea.sflag [#allocation4], 1
    %15 = vsyncpa %s14, 0
    loop: start=0, step=1, limit=4
    $region2: #{tpu_custom_call.1} parent=1 // loop_pre_header
      _
    $region3: #{tpu_custom_call.1} parent=1 // loop_header
      %s17 = sphi 0, %s21
      %p18 = scmp.ge.s32.totalorder %s17, 4
      %s24 = sphi 0, %s43
      %s25 = sphi 0, %s39
      %s26 = sphi 0, %s35
      %s27 = sphi 0, %s24
      %s28 = sphi 0, %s25
      %s29 = sphi 0, %s26
      %s30 = sphi 0, %s27
      %s31 = sphi 0, %s28
      %s32 = sphi 0, %s29
      %s50 = sphi 0, %s52
      %s53 = sphi 0, %s50
      %s54 = sphi 0, %s53
      %s70 = sphi 0, %s54
      %s80 = sphi 0, %s82
      %s83 = sphi 0, %s80
      %s84 = sphi 0, %s83
      %s100 = sphi 0, %s84
      %s108 = sphi 0, %s110
      %s111 = sphi 0, %s108
      %s112 = sphi 0, %s111
      %s128 = sphi 0, %s112
    $region4: #{tpu_custom_call.1} parent=1 // loop_header_branch
      %20 = sbr.rel (%p18) target = $region8
    $region5: #{tpu_custom_call.1} parent=1 // loop_body
      %s22 = ssub.s32 %s17, 1
      %s23 = ssub.s32 %s17, 2
      %s33 = sadd.s32 1, %s26
      %p34 = scmp.ge.s32.totalorder %s33, 1
      %s35 = scalar_select %p34, 0, %s33
      %s36 = sadd.s32 1, %s25
      %s37 = scalar_select %p34, %s36, %s25
      %p38 = scmp.ge.s32.totalorder %s37, 1
      %s39 = scalar_select %p38, 0, %s37
      %s40 = sadd.s32 1, %s24
      %s41 = scalar_select %p38, %s40, %s24
      %p42 = scmp.ge.s32.totalorder %s41, 2
      %s43 = scalar_select %p42, 0, %s41
      %s44 = sadd.s32 %s25, %s26
      %s45 = sadd.s32 %s39, %s35
      %s46 = ssub.s32 %s24, %s43
      %s47 = ssub.s32 %s44, %s45
      %s48 = sor.u32 %s46, %s47
      %p49 = scmp.eq.s32.totalorder %s48, 0
      %s51 = sadd.s32 %s50, 1
      %s52 = scalar_select %p49, %s50, %s51
      %p55 = pneg %p49
      %p56 = scmp.eq.s32.totalorder %s17, 1
      %p57 = por %p55, %p56
      %p58 = scmp.ne.s32.totalorder %s50, %s53
      %p59 = scmp.eq.s32.totalorder %s17, 0
      %p60 = por %p58, %p59
      %p61 = scmp.ne.s32.totalorder %s50, %s53
      %p62 = scmp.eq.s32.totalorder %s22, 1
      %p63 = por %p61, %p62
      %p64 = scmp.ne.s32.totalorder %s53, %s54
      %p65 = scmp.eq.s32.totalorder %s22, 0
      %p66 = por %p64, %p65
      %p67 = scmp.ne.s32.totalorder %s53, %s54
      %p68 = scmp.eq.s32.totalorder %s23, 1
      %p69 = por %p67, %p68
      %p71 = scmp.ne.s32.totalorder %s54, %s70
      %p72 = scmp.eq.s32.totalorder %s23, 0
      %p73 = por %p71, %p72
      %s74 = sadd.s32 %s25, %s26
      %s75 = sadd.s32 %s39, %s35
      %s76 = ssub.s32 %s24, %s43
      %s77 = ssub.s32 %s74, %s75
      %s78 = sor.u32 %s76, %s77
      %p79 = scmp.eq.s32.totalorder %s78, 0
      %s81 = sadd.s32 %s80, 1
      %s82 = scalar_select %p79, %s80, %s81
      %p85 = pneg %p79
      %p86 = scmp.eq.s32.totalorder %s17, 1
      %p87 = por %p85, %p86
      %p88 = scmp.ne.s32.totalorder %s80, %s83
      %p89 = scmp.eq.s32.totalorder %s17, 0
      %p90 = por %p88, %p89
      %p91 = scmp.ne.s32.totalorder %s80, %s83
      %p92 = scmp.eq.s32.totalorder %s22, 1
      %p93 = por %p91, %p92
      %p94 = scmp.ne.s32.totalorder %s83, %s84
      %p95 = scmp.eq.s32.totalorder %s22, 0
      %p96 = por %p94, %p95
      %p97 = scmp.ne.s32.totalorder %s83, %s84
      %p98 = scmp.eq.s32.totalorder %s23, 1
      %p99 = por %p97, %p98
      %p101 = scmp.ne.s32.totalorder %s84, %s100
      %p102 = scmp.eq.s32.totalorder %s23, 0
      %p103 = por %p101, %p102
      %s104 = ssub.s32 %s24, %s43
      %s105 = ssub.s32 %s25, %s39
      %s106 = sor.u32 %s104, %s105
      %p107 = scmp.eq.s32.totalorder %s106, 0
      %s109 = sadd.s32 %s108, 1
      %s110 = scalar_select %p107, %s108, %s109
      %p113 = pneg %p107
      %p114 = scmp.eq.s32.totalorder %s17, 1
      %p115 = por %p113, %p114
      %p116 = scmp.ne.s32.totalorder %s108, %s111
      %p117 = scmp.eq.s32.totalorder %s17, 0
      %p118 = por %p116, %p117
      %p119 = scmp.ne.s32.totalorder %s108, %s111
      %p120 = scmp.eq.s32.totalorder %s22, 1
      %p121 = por %p119, %p120
      %p122 = scmp.ne.s32.totalorder %s111, %s112
      %p123 = scmp.eq.s32.totalorder %s22, 0
      %p124 = por %p122, %p123
      %p125 = scmp.ne.s32.totalorder %s111, %s112
      %p126 = scmp.eq.s32.totalorder %s23, 1
      %p127 = por %p125, %p126
      %p129 = scmp.ne.s32.totalorder %s112, %s128
      %p130 = scmp.eq.s32.totalorder %s23, 0
      %p131 = por %p129, %p130
      %p132 = scmp.le.s32.totalorder 1, %s17
      %p133 = scmp.lt.s32.totalorder %s17, 3
      %p134 = pnand %p132, %p133
      %p135 = pneg %p134
      // Predicated region
      $region9: #{tpu_custom_call.1} parent=5 // pred_check
        _
      $region10: #{tpu_custom_call.1} parent=5 // pred_check_branch
        %137 = sbr.rel (%p134) target = $region12
      $region11: #{tpu_custom_call.1} parent=5 // pred_region
        %s138 = ssub.s32 %s17, 1
      $region12: #{tpu_custom_call.1} parent=5 // pred_fallthru
        _
      %p139 = scmp.lt.s32.totalorder %s17, 2
      // Predicated region
      $region13: #{tpu_custom_call.1} parent=5 // pred_check
        %p140 = pneg %p139
      $region14: #{tpu_custom_call.1} parent=5 // pred_check_branch
        %142 = sbr.rel (%p140) target = $region16
      $region15: #{tpu_custom_call.1} parent=5 // pred_region
        // Predicated region
        $region17: #{tpu_custom_call.1} parent=15 // pred_check
          %p143 = pneg %p60
        $region18: #{tpu_custom_call.1} parent=15 // pred_check_branch
          %145 = sbr.rel (%p143) target = $region20
        $region19: #{tpu_custom_call.1} parent=15 // pred_region
          %s146 = sand.u32 %s50, 1
          %s147 = scalar_lea.sflag [#allocation3], %s146
          %s148 = sand.u32 %s50, 1
          %s149 = smul.addr %s148, 8
          %s150 = scalar_lea.vmem [#allocation2], %s149
          %s151 = sadd.s32 %s25, %s26
          %s153 = ssub.s32 128, 128
          %154 = vsyncadd %s147, %s153
          %s155 = smul.addr %s24, 4
          %s156 = sadd.s32 %s151, %s155
          %s157 = smul.addr %s156, 32
          %s158 = scalar_lea.hbm %s0, %s157
          %s159 = sshll.u32 %s150, 4
          %s160 = int_to_ptr.vmem [resolvable:$true] %s159
          %165 = dma.hbm_to_vmem [thread:$0]  %s158, 128, %s160, %s147, 32, 32, 2
        $region20: #{tpu_custom_call.1} parent=15 // pred_fallthru
          _
        // Predicated region
        $region21: #{tpu_custom_call.1} parent=15 // pred_check
          %p166 = pneg %p90
        $region22: #{tpu_custom_call.1} parent=15 // pred_check_branch
          %168 = sbr.rel (%p166) target = $region24
        $region23: #{tpu_custom_call.1} parent=15 // pred_region
          %s169 = sand.u32 %s80, 1
          %s170 = scalar_lea.sflag [#allocation6], %s169
          %s171 = sand.u32 %s80, 1
          %s172 = smul.addr %s171, 2
          %s173 = scalar_lea.vmem [#allocation5], %s172
          %s174 = sadd.s32 %s25, %s26
          %s176 = ssub.s32 32, 32
          %177 = vsyncadd %s170, %s176
          %s178 = sadd.s32 %s174, %s24
          %s179 = smul.addr %s178, 32
          %s180 = scalar_lea.hbm %s1, %s179
          %s182 = sshll.u32 %s173, 4
          %s183 = int_to_ptr.vmem [resolvable:$true] %s182
          %185 = dma.hbm_to_vmem [thread:$0]  %s180, 32, %s183, %s170
        $region24: #{tpu_custom_call.1} parent=15 // pred_fallthru
          _
      $region16: #{tpu_custom_call.1} parent=5 // pred_fallthru
        _
      %p186 = scmp.le.s32.totalorder 1, %s17
      %p187 = scmp.lt.s32.totalorder %s17, 3
      %p188 = pnand %p186, %p187
      %p189 = pneg %p188
      // Predicated region
      $region25: #{tpu_custom_call.1} parent=5 // pred_check
        _
      $region26: #{tpu_custom_call.1} parent=5 // pred_check_branch
        %191 = sbr.rel (%p188) target = $region28
      $region27: #{tpu_custom_call.1} parent=5 // pred_region
        %s192 = ssub.s32 %s17, 1
        %s193 = sand.u32 %s53, 1
        %s194 = scalar_lea.sflag [#allocation3], %s193
        %s195 = sand.u32 %s53, 1
        %s196 = smul.addr %s195, 8
        %s197 = scalar_lea.vmem [#allocation2], %s196
        // Predicated region
        $region29: #{tpu_custom_call.1} parent=27 // pred_check
          %p198 = pneg %p66
        $region30: #{tpu_custom_call.1} parent=27 // pred_check_branch
          %200 = sbr.rel (%p198) target = $region32
        $region31: #{tpu_custom_call.1} parent=27 // pred_region
          %201 = dma.done %s194, 128
        $region32: #{tpu_custom_call.1} parent=27 // pred_fallthru
          _
        %s202 = sand.u32 %s83, 1
        %s203 = scalar_lea.sflag [#allocation6], %s202
        %s204 = sand.u32 %s83, 1
        %s205 = smul.addr %s204, 2
        %s206 = scalar_lea.vmem [#allocation5], %s205
        // Predicated region
        $region33: #{tpu_custom_call.1} parent=27 // pred_check
          %p207 = pneg %p96
        $region34: #{tpu_custom_call.1} parent=27 // pred_check_branch
          %209 = sbr.rel (%p207) target = $region36
        $region35: #{tpu_custom_call.1} parent=27 // pred_region
          %210 = dma.done %s203, 32
        $region36: #{tpu_custom_call.1} parent=27 // pred_fallthru
          _
        %s211 = sand.u32 %s53, 1
        %s212 = scalar_lea.sflag [#allocation3], %s211
        %s213 = sand.u32 %s53, 1
        %s214 = smul.addr %s213, 8
        %s215 = scalar_lea.vmem [#allocation2], %s214
        %p216 = pneg %p66
        %p217 = pneg %p63
        %s218 = sand.u32 %s83, 1
        %s219 = scalar_lea.sflag [#allocation6], %s218
        %s220 = sand.u32 %s83, 1
        %s221 = smul.addr %s220, 2
        %s222 = scalar_lea.vmem [#allocation5], %s221
        %p223 = pneg %p96
        %p224 = pneg %p93
        %p225 = pneg %p124
        %p226 = pneg %p121
        %s227 = sand.u32 %s111, 1
        %s228 = scalar_lea.sflag [#allocation4], %s227
        %s229 = sand.u32 %s111, 1
        %s230 = smul.addr %s229, 2
        %s231 = scalar_lea.vmem [#allocation7], %s230
        %s232 = sadd.s32 %s28, %s29
        %s233 = sadd.s32 %s28, %s29
        %p234 = scmp.eq.s32.totalorder %s29, 0
        // Predicated region
        $region37: #{tpu_custom_call.1} parent=27 // pred_check
          %p235 = pneg %p234
        $region38: #{tpu_custom_call.1} parent=27 // pred_check_branch
          %237 = sbr.rel (%p235) target = $region40
        $region39: #{tpu_custom_call.1} parent=27 // pred_region
          %238 = vst [vmem:[%s231] sm:$0x3] 0.0
        $region40: #{tpu_custom_call.1} parent=27 // pred_fallthru
          _
        %v239 = vld [vmem:[%s206] sm:$0x3]
        %v240 = vld [vmem:[%s197] sm:$0x3]
        %s241 = scalar_lea.vmem %s197, 2 [#allocation2]
        %v242 = vld [vmem:[%s241] sm:$0x3]
        %s243 = scalar_lea.vmem %s197, 4 [#allocation2]
        %v244 = vld [vmem:[%s243] sm:$0x3]
        %s245 = scalar_lea.vmem %s197, 6 [#allocation2]
        %v246 = vld [vmem:[%s245] sm:$0x3]
        %v247 = vmax.f32 %v240, %v242
        %v248 = vmax.f32 %v247, %v244
        %v249 = vmax.f32 %v248, %v246
        %v250 = vsub.f32 %v240, %v249
        %v251 = vmul.f32 %v250, 1.442695
        %v252 = vpow.pop %v251
        %vm253 = vcmp.eq.s32.totalorder %v239, 0
        %v254 = vsel %vm253, %v250, 0.0
        %v255 = vsub.f32 %v242, %v249
        %v256 = vmul.f32 %v255, 1.442695
        %v257 = vpow.pop %v256
        %v258 = vadd.f32 %v252, %v257
        %vm259 = vcmp.eq.s32.totalorder %v239, 1
        %v260 = vsel %vm259, %v255, %v254
        %v261 = vsub.f32 %v244, %v249
        %v262 = vmul.f32 %v261, 1.442695
        %v263 = vpow.pop %v262
        %v264 = vadd.f32 %v258, %v263
        %vm265 = vcmp.eq.s32.totalorder %v239, 2
        %v266 = vsel %vm265, %v261, %v260
        %v267 = vsub.f32 %v246, %v249
        %v268 = vmul.f32 %v267, 1.442695
        %v269 = vpow.pop %v268
        %v270 = vadd.f32 %v264, %v269
        %vm271 = vcmp.eq.s32.totalorder %v239, 3
        %v272 = vsel %vm271, %v267, %v266
        %v273 = vlog2.pop %v270
        %v274 = vmul.f32 %v273, 0.6931472
        %v275 = vsub.f32 %v274, %v272
        %v276 = vld [vmem:[%s231] sm:$0x3]
        %v277 = vadd.f32 %v276, %v275
        %278 = vst [vmem:[%s231] sm:$0x3] %v277
        %s279 = sand.u32 %s111, 1
        %s280 = scalar_lea.sflag [#allocation4], %s279
        %s281 = sand.u32 %s111, 1
        %s282 = smul.addr %s281, 2
        %s283 = scalar_lea.vmem [#allocation7], %s282
        // Predicated region
        $region41: #{tpu_custom_call.1} parent=27 // pred_check
          %p284 = pneg %p121
        $region42: #{tpu_custom_call.1} parent=27 // pred_check_branch
          %286 = sbr.rel (%p284) target = $region44
        $region43: #{tpu_custom_call.1} parent=27 // pred_region
          %s288 = ssub.s32 32, 32
          %289 = vsyncadd %s280, %s288
          %s290 = sadd.s32 %s28, %s27
          %s291 = smul.addr %s290, 32
          %s292 = scalar_lea.hbm %s2, %s291
          %s294 = sshll.u32 %s283, 4
          %s295 = int_to_ptr.vmem [resolvable:$true] %s294
          %297 = dma.vmem_to_hbm [thread:$0]  %s295, 32, %s292, %s280
        $region44: #{tpu_custom_call.1} parent=27 // pred_fallthru
          _
      $region28: #{tpu_custom_call.1} parent=5 // pred_fallthru
        _
      %p298 = scmp.le.s32.totalorder 2, %s17
      // Predicated region
      $region45: #{tpu_custom_call.1} parent=5 // pred_check
        %p299 = pneg %p298
      $region46: #{tpu_custom_call.1} parent=5 // pred_check_branch
        %301 = sbr.rel (%p299) target = $region48
      $region47: #{tpu_custom_call.1} parent=5 // pred_region
        %s302 = ssub.s32 %s17, 2
        // Predicated region
        $region49: #{tpu_custom_call.1} parent=47 // pred_check
          %p303 = pneg %p127
        $region50: #{tpu_custom_call.1} parent=47 // pred_check_branch
          %305 = sbr.rel (%p303) target = $region52
        $region51: #{tpu_custom_call.1} parent=47 // pred_region
          %s306 = sand.u32 %s112, 1
          %s307 = scalar_lea.sflag [#allocation4], %s306
          %s308 = sand.u32 %s112, 1
          %s309 = smul.addr %s308, 2
          %s310 = scalar_lea.vmem [#allocation7], %s309
          %311 = dma.done %s307, 32
        $region52: #{tpu_custom_call.1} parent=47 // pred_fallthru
          _
      $region48: #{tpu_custom_call.1} parent=5 // pred_fallthru
        _
    $region6: #{tpu_custom_call.1} parent=1 // loop_footer
      %s21 = sadd.s32 1, %s17
    $region7: #{tpu_custom_call.1} parent=1 // loop_footer_branch
      %16 = sbr.rel target = $region3
    $region8: #{tpu_custom_call.1} parent=1 // loop_exit
      _
    %312 = vsyncpa [#allocation3], 1
    %s313 = scalar_lea.sflag [#allocation3], 1
    %314 = vsyncpa %s313, 1
    %315 = vsyncpa [#allocation6], 1
    %s316 = scalar_lea.sflag [#allocation6], 1
    %317 = vsyncpa %s316, 1
    %318 = vsyncpa [#allocation4], 1
    %s319 = scalar_lea.sflag [#allocation4], 1
    %320 = vsyncpa %s319, 1

</llo_original>
